<compile_context>
chip_gen: v7x
topology: tpu7x:2x2x1
jax: 0.10.0
libtpu: 0.0.40
codegen_flags: <defaults>
</compile_context>

<pallas_src>
import functools

import jax
import jax.numpy as jnp
from jax.experimental import pallas as pl
from jax.experimental.pallas import tpu as pltpu

_LANE = 128  # TPU lane width


def _round_up(n, m):
    return ((n + m - 1) // m) * m


def _mlp_kernel(x_ref, w1_ref, b1_ref, w2_ref, b2_ref, w3_ref, b3_ref, o_ref,
                *, compute_dtype):
    # TODO(synk): if exact f32 agreement is needed at large K, consider an explicit
    # precision setting on the dots; at these dims the default passes 1e-5.
    x = x_ref[...].astype(compute_dtype)
    # Layer 1: Linear + ReLU (MXU matmul, f32 accumulation; epilogue in f32).
    h = jnp.dot(x, w1_ref[...].astype(compute_dtype),
                preferred_element_type=jnp.float32)
    h = jnp.maximum(h + b1_ref[...], 0.0)
    # Layer 2: Linear + ReLU.
    h = jnp.dot(h.astype(compute_dtype), w2_ref[...].astype(compute_dtype),
                preferred_element_type=jnp.float32)
    h = jnp.maximum(h + b2_ref[...], 0.0)
    # Layer 3: Linear (no activation), stored at native output width.
    out = jnp.dot(h.astype(compute_dtype), w3_ref[...].astype(compute_dtype),
                  preferred_element_type=jnp.float32) + b3_ref[...]
    o_ref[...] = out.astype(o_ref.dtype)


def _choose_block_b(B, D_in, D_out):
    # Single grid step for small/medium batches: on 1-TC chips the grid is a serial
    # loop, so splitting a small batch only adds per-step pipeline overhead.  Large
    # batches get 1024-row tiles (f32 intermediates live in VMEM scratch, not the
    # vreg file, so they do not constrain the tile), clamped by a VMEM budget for
    # the double-buffered x/out tiles.
    if B <= 1024:
        return int(B)
    budget = 4 << 20                       # bytes reserved for x/out double-buffers
    per_row = 2 * 4 * (D_in + D_out)       # 2 buffers x f32 bytes per row
    cap = max(8, (budget // per_row) // 8 * 8)
    return int(min(1024, cap))


@functools.partial(jax.jit, static_argnames=("block_b", "use_bf16"))
def auxiliary_mlp(x, w1, b1, w2, b2, w3, b3, *, block_b=None, use_bf16=False):
    """Fused MLP forward.

    x: (B, D_in) float32.
    w1..b3: pre-padded params from pad_params() - weights (in, out), biases (1, out).
    Returns (B, D_out) with D_out = w3.shape[1] (native, e.g. 3).
    """
    B, D_in = x.shape
    H1p = w1.shape[1]
    H2p = w2.shape[1]
    D_out = w3.shape[1]

    if block_b is None:
        block_b = _choose_block_b(B, D_in, D_out)
    grid = (pl.cdiv(B, block_b),)

    compute_dtype = jnp.bfloat16 if use_bf16 else jnp.float32
    kernel = functools.partial(_mlp_kernel, compute_dtype=compute_dtype)

    # Cost estimate from the arrays actually streamed (padded hidden widths are the
    # real MXU/DMA work; x and the output are native width).
    flops = 2 * B * (D_in * H1p + H1p * H2p + H2p * D_out)
    bytes_accessed = 4 * (x.size + w1.size + b1.size + w2.size + b2.size
                          + w3.size + b3.size + B * D_out)

    out = pl.pallas_call(
        kernel,
        out_shape=jax.ShapeDtypeStruct((B, D_out), x.dtype),
        grid_spec=pl.GridSpec(
            grid=grid,
            in_specs=[
                # x tile at native feature width (last block dim == full array dim).
                pl.BlockSpec((block_b, D_in), lambda i: (i, 0)),
                # Weights/biases are small -> fully resident; constant index_map
                # means they are not re-fetched across grid steps.
                pl.BlockSpec((D_in, H1p), lambda i: (0, 0)),
                pl.BlockSpec((1, H1p), lambda i: (0, 0)),
                pl.BlockSpec((H1p, H2p), lambda i: (0, 0)),
                pl.BlockSpec((1, H2p), lambda i: (0, 0)),
                pl.BlockSpec((H2p, D_out), lambda i: (0, 0)),
                pl.BlockSpec((1, D_out), lambda i: (0, 0)),
            ],
            out_specs=pl.BlockSpec((block_b, D_out), lambda i: (i, 0)),
        ),
        compiler_params=pltpu.CompilerParams(
            # Batch rows are independent; lets v7x shard grid steps across its two
            # TensorCores when the grid has more than one step.  VMEM footprint at
            # these tile sizes is far below every generation's scoped default, so
            # vmem_limit_bytes is left unset.
            dimension_semantics=("parallel",),
        ),
        cost_estimate=pl.CostEstimate(
            flops=flops, transcendentals=0, bytes_accessed=bytes_accessed,
        ),
    )(x, w1, b1, w2, b2, w3, b3)

    return out


def pad_params(w1, b1, w2, b2, w3, b3):
    """One-time (init-time) lane-padding of the hidden widths to multiples of 128.

    Zero padding is inert: padded hidden columns are relu(0 + 0) = 0 and multiply
    zero rows of the following weight matrix.  Input (w1 rows) and output (w3 cols,
    b3) feature dims stay at their native widths.
    """
    H1, H2 = w1.shape[1], w2.shape[1]
    H1p, H2p = _round_up(H1, _LANE), _round_up(H2, _LANE)
    w1p = jnp.pad(w1, ((0, 0), (0, H1p - H1)))
    b1p = jnp.pad(b1, ((0, 0), (0, H1p - H1)))
    w2p = jnp.pad(w2, ((0, H1p - H1), (0, H2p - H2)))
    b2p = jnp.pad(b2, ((0, 0), (0, H2p - H2)))
    w3p = jnp.pad(w3, ((0, H2p - H2), (0, 0)))
    return w1p, b1p, w2p, b2p, w3p, b3


def init_params(key, input_dim, hidden_dims=(32, 32), output_dim=3):
    """Deterministic parameter init (uniform, PyTorch-Linear-like bound)."""
    dims = [input_dim] + list(hidden_dims) + [output_dim]
    params = []
    for i in range(len(dims) - 1):
        fan_in, fan_out = dims[i], dims[i + 1]
        key, kw, kb = jax.random.split(key, 3)
        bound = 1.0 / (fan_in ** 0.5)
        w = jax.random.uniform(kw, (fan_in, fan_out), jnp.float32, -bound, bound)
        b = jax.random.uniform(kb, (1, fan_out), jnp.float32, -bound, bound)
        params += [w, b]
    return tuple(params)


def reference_mlp(x, w1, b1, w2, b2, w3, b3):
    h = jnp.maximum(x @ w1 + b1, 0.0)
    h = jnp.maximum(h @ w2 + b2, 0.0)
    return h @ w3 + b3


if __name__ == "__main__":
    key = jax.random.PRNGKey(0)
    k_x, k_p = jax.random.split(key)

    batch, input_dim = 16, 32          # hidden_dims=[32, 32], output_dim=3
    x = jax.random.normal(k_x, (batch, input_dim), jnp.float32)
    params = init_params(k_p, input_dim)
    padded_params = pad_params(*params)    # done once, outside the forward pass

    out = auxiliary_mlp(x, *padded_params)
    out = jax.block_until_ready(out)

    ref = reference_mlp(x, *params)
    assert out.shape == (batch, 3)
    assert jnp.allclose(out, ref, atol=1e-5, rtol=1e-5)

    print("KERNEL_OK")
</pallas_src>

<mosaic_0001>
module attributes {stable_mosaic.version = 11 : i64} {
  func.func @_mlp_kernel(%arg0: i32, %arg1: memref<16x32xf32, #tpu.memory_space<vmem>>, %arg2: memref<32x128xf32, #tpu.memory_space<vmem>>, %arg3: memref<1x128xf32, #tpu.memory_space<vmem>>, %arg4: memref<128x128xf32, #tpu.memory_space<vmem>>, %arg5: memref<1x128xf32, #tpu.memory_space<vmem>>, %arg6: memref<128x3xf32, #tpu.memory_space<vmem>>, %arg7: memref<1x3xf32, #tpu.memory_space<vmem>>, %arg8: memref<16x3xf32, #tpu.memory_space<vmem>>) attributes {dimension_semantics = [#tpu.dimension_semantics<parallel>], iteration_bounds = array<i64: 1>, scalar_prefetch = 0 : i64, scratch_operands = 0 : i64, tpu.core_type = #tpu.core_type<tc>, window_params = [{transform_indices = @transform_0, window_bounds = array<i64: 16, 32>}, {pipeline_mode = #tpu.pipeline_mode<synchronous>, transform_indices = @transform_1, window_bounds = array<i64: 32, 128>}, {pipeline_mode = #tpu.pipeline_mode<synchronous>, transform_indices = @transform_2, window_bounds = array<i64: 1, 128>}, {pipeline_mode = #tpu.pipeline_mode<synchronous>, transform_indices = @transform_3, window_bounds = array<i64: 128, 128>}, {pipeline_mode = #tpu.pipeline_mode<synchronous>, transform_indices = @transform_4, window_bounds = array<i64: 1, 128>}, {pipeline_mode = #tpu.pipeline_mode<synchronous>, transform_indices = @transform_5, window_bounds = array<i64: 128, 3>}, {pipeline_mode = #tpu.pipeline_mode<synchronous>, transform_indices = @transform_6, window_bounds = array<i64: 1, 3>}, {transform_indices = @transform_7, window_bounds = array<i64: 16, 3>}]} {
    %c0 = arith.constant 0 : index
    %c0_0 = arith.constant 0 : index
    %0 = vector.load %arg1[%c0, %c0_0] : memref<16x32xf32, #tpu.memory_space<vmem>>, vector<16x32xf32>
    %c0_1 = arith.constant 0 : index
    %c0_2 = arith.constant 0 : index
    %1 = vector.load %arg2[%c0_1, %c0_2] : memref<32x128xf32, #tpu.memory_space<vmem>>, vector<32x128xf32>
    %cst = arith.constant dense<0.000000e+00> : vector<16x128xf32>
    %2 = tpu.matmul %0, %1, %cst {dimension_numbers = #tpu.dot_dimension_numbers<[1], [0], [0], [1], [0, 0, 1, 1], [], []>} : vector<16x32xf32>, vector<32x128xf32>, vector<16x128xf32> -> vector<16x128xf32>
    %c0_3 = arith.constant 0 : index
    %c0_4 = arith.constant 0 : index
    %3 = vector.load %arg3[%c0_3, %c0_4] : memref<1x128xf32, #tpu.memory_space<vmem>>, vector<1x128xf32>
    %4 = vector.broadcast %3 : vector<1x128xf32> to vector<16x128xf32>
    %5 = arith.addf %2, %4 : vector<16x128xf32>
    %cst_5 = arith.constant 0.000000e+00 : f32
    %6 = vector.broadcast %cst_5 : f32 to vector<16x128xf32>
    %7 = arith.maximumf %5, %6 : vector<16x128xf32>
    %c0_6 = arith.constant 0 : index
    %c0_7 = arith.constant 0 : index
    %8 = vector.load %arg4[%c0_6, %c0_7] : memref<128x128xf32, #tpu.memory_space<vmem>>, vector<128x128xf32>
    %cst_8 = arith.constant dense<0.000000e+00> : vector<16x128xf32>
    %9 = tpu.matmul %7, %8, %cst_8 {dimension_numbers = #tpu.dot_dimension_numbers<[1], [0], [0], [1], [0, 0, 1, 1], [], []>} : vector<16x128xf32>, vector<128x128xf32>, vector<16x128xf32> -> vector<16x128xf32>
    %c0_9 = arith.constant 0 : index
    %c0_10 = arith.constant 0 : index
    %10 = vector.load %arg5[%c0_9, %c0_10] : memref<1x128xf32, #tpu.memory_space<vmem>>, vector<1x128xf32>
    %11 = vector.broadcast %10 : vector<1x128xf32> to vector<16x128xf32>
    %12 = arith.addf %9, %11 : vector<16x128xf32>
    %cst_11 = arith.constant 0.000000e+00 : f32
    %13 = vector.broadcast %cst_11 : f32 to vector<16x128xf32>
    %14 = arith.maximumf %12, %13 : vector<16x128xf32>
    %c0_12 = arith.constant 0 : index
    %c0_13 = arith.constant 0 : index
    %15 = vector.load %arg6[%c0_12, %c0_13] : memref<128x3xf32, #tpu.memory_space<vmem>>, vector<128x3xf32>
    %cst_14 = arith.constant dense<0.000000e+00> : vector<16x3xf32>
    %16 = tpu.matmul %14, %15, %cst_14 {dimension_numbers = #tpu.dot_dimension_numbers<[1], [0], [0], [1], [0, 0, 1, 1], [], []>} : vector<16x128xf32>, vector<128x3xf32>, vector<16x3xf32> -> vector<16x3xf32>
    %c0_15 = arith.constant 0 : index
    %c0_16 = arith.constant 0 : index
    %17 = vector.load %arg7[%c0_15, %c0_16] : memref<1x3xf32, #tpu.memory_space<vmem>>, vector<1x3xf32>
    %18 = vector.broadcast %17 : vector<1x3xf32> to vector<16x3xf32>
    %19 = arith.addf %16, %18 : vector<16x3xf32>
    %c0_17 = arith.constant 0 : index
    %c0_18 = arith.constant 0 : index
    %20 = vector.load %arg8[%c0_17, %c0_18] : memref<16x3xf32, #tpu.memory_space<vmem>>, vector<16x3xf32>
    tpu.vector_store %arg8[%c0_17, %c0_18], %19 {strides = array<i32>} : memref<16x3xf32, #tpu.memory_space<vmem>>, vector<16x3xf32>,
    return
  }
  func.func @transform_0(%arg0: i32) -> (i32, i32) {
    %c0_i32 = arith.constant 0 : i32
    %c0_i32_0 = arith.constant 0 : i32
    return %arg0, %c0_i32 : i32, i32
  }
  func.func @transform_1(%arg0: i32) -> (i32, i32) {
    %c0_i32 = arith.constant 0 : i32
    %c0_i32_0 = arith.constant 0 : i32
    %c0_i32_1 = arith.constant 0 : i32
    return %c0_i32, %c0_i32_0 : i32, i32
  }
  func.func @transform_2(%arg0: i32) -> (i32, i32) {
    %c0_i32 = arith.constant 0 : i32
    %c0_i32_0 = arith.constant 0 : i32
    %c0_i32_1 = arith.constant 0 : i32
    return %c0_i32, %c0_i32_0 : i32, i32
  }
  func.func @transform_3(%arg0: i32) -> (i32, i32) {
    %c0_i32 = arith.constant 0 : i32
    %c0_i32_0 = arith.constant 0 : i32
    %c0_i32_1 = arith.constant 0 : i32
    return %c0_i32, %c0_i32_0 : i32, i32
  }
  func.func @transform_4(%arg0: i32) -> (i32, i32) {
    %c0_i32 = arith.constant 0 : i32
    %c0_i32_0 = arith.constant 0 : i32
    %c0_i32_1 = arith.constant 0 : i32
    return %c0_i32, %c0_i32_0 : i32, i32
  }
  func.func @transform_5(%arg0: i32) -> (i32, i32) {
    %c0_i32 = arith.constant 0 : i32
    %c0_i32_0 = arith.constant 0 : i32
    %c0_i32_1 = arith.constant 0 : i32
    return %c0_i32, %c0_i32_0 : i32, i32
  }
  func.func @transform_6(%arg0: i32) -> (i32, i32) {
    %c0_i32 = arith.constant 0 : i32
    %c0_i32_0 = arith.constant 0 : i32
    %c0_i32_1 = arith.constant 0 : i32
    return %c0_i32, %c0_i32_0 : i32, i32
  }
  func.func @transform_7(%arg0: i32) -> (i32, i32) {
    %c0_i32 = arith.constant 0 : i32
    %c0_i32_0 = arith.constant 0 : i32
    return %arg0, %c0_i32 : i32, i32
  }
}

</mosaic_0001>

<llo_original>
// kernel: auxiliary_mlp.1
$region0: #{auxiliary_mlp.1}
  #allocation0 [shape = 'u32[]', space=smem, size = 0x4, offset = 0x4, fixed_abs, tag = 'smem constant byte address 0x4 - core index']
  #allocation1 [shape = 'u32[144,128]{1,0:T(1,128)}', space=vmem, size = 0x12000, scoped, tag = 'internal scratch']
  %s0 = inlined_call_operand.hbm [shape: f32[16,32], index: 0, kind: input, shape index: {}]
  %s1 = inlined_call_operand.hbm [shape: f32[32,128], index: 1, kind: input, shape index: {}]
  %s2 = inlined_call_operand.vmem [shape: f32[1,128], index: 2, kind: input, shape index: {}]
  %s3 = inlined_call_operand.vmem [shape: f32[128,128], index: 3, kind: input, shape index: {}]
  %s4 = inlined_call_operand.vmem [shape: f32[1,128], index: 4, kind: input, shape index: {}]
  %s5 = inlined_call_operand.vmem [shape: f32[128,3], index: 5, kind: input, shape index: {}]
  %s6 = inlined_call_operand.vmem [shape: f32[1,3], index: 6, kind: input, shape index: {}]
  %s7 = inlined_call_operand.vmem [shape: f32[16,3], index: 7, kind: output, shape index: {}]
  %s8 = sld [smem:[#allocation0]]
  $region46: #{auxiliary_mlp.1} parent=0
    _
  %s10 = ssub.s32 1, %s8
  %s11 = scalar_select 0, %s10, %s8
  $region1: #{auxiliary_mlp.1} parent=0
    #allocation2 [shape = 'u8[8192]{0}', space=vmem, size = 0x2000, scoped, tag = 'input window, operand 0, single buffered']
    #allocation3 [shape = 's32[1]{0}', space=sflag, size = 0x4, scoped, tag = 'scoped memory for auxiliary_mlp.1']
    #allocation4 [shape = 'u8[16384]{0}', space=vmem, size = 0x4000, scoped, tag = 'input window, operand 1, single buffered']
    #allocation5 [shape = 's32[1]{0}', space=sflag, size = 0x4, scoped, tag = 'scoped memory for auxiliary_mlp.1']
    %12 = vsyncpa [#allocation3], 0
    %13 = vsyncpa [#allocation5], 0
    // Predicated region
    $region2: #{auxiliary_mlp.1} parent=1 // pred_check
      _
    $region3: #{auxiliary_mlp.1} parent=1 // pred_check_branch
      %15 = sbr.rel (0) target = $region5
    $region4: #{auxiliary_mlp.1} parent=1 // pred_region
      %s17 = ssub.s32 256, 256
      %18 = vsyncadd [#allocation3], %s17
      %s19 = sshll.u32 [#allocation2], 4
      %s20 = int_to_ptr.vmem [resolvable:$true] %s19
      %25 = dma.hbm_to_vmem [thread:$0]  %s0, 256, %s20, [#allocation3], 128, 128, 8
    $region5: #{auxiliary_mlp.1} parent=1 // pred_fallthru
      _
    // Predicated region
    $region6: #{auxiliary_mlp.1} parent=1 // pred_check
      _
    $region7: #{auxiliary_mlp.1} parent=1 // pred_check_branch
      %27 = sbr.rel (0) target = $region9
    $region8: #{auxiliary_mlp.1} parent=1 // pred_region
      %s29 = ssub.s32 512, 512
      %30 = vsyncadd [#allocation5], %s29
      %s31 = sshll.u32 [#allocation4], 4
      %s32 = int_to_ptr.vmem [resolvable:$true] %s31
      %37 = dma.hbm_to_vmem [thread:$0]  %s1, 512, %s32, [#allocation5], 128, 128, 8
    $region9: #{auxiliary_mlp.1} parent=1 // pred_fallthru
      _
    // Predicated region
    $region10: #{auxiliary_mlp.1} parent=1 // pred_check
      _
    $region11: #{auxiliary_mlp.1} parent=1 // pred_check_branch
      %39 = sbr.rel (0) target = $region13
    $region12: #{auxiliary_mlp.1} parent=1 // pred_region
      _
    $region13: #{auxiliary_mlp.1} parent=1 // pred_fallthru
      _
    // Predicated region
    $region14: #{auxiliary_mlp.1} parent=1 // pred_check
      _
    $region15: #{auxiliary_mlp.1} parent=1 // pred_check_branch
      %41 = sbr.rel (0) target = $region17
    $region16: #{auxiliary_mlp.1} parent=1 // pred_region
      _
    $region17: #{auxiliary_mlp.1} parent=1 // pred_fallthru
      _
    // Predicated region
    $region18: #{auxiliary_mlp.1} parent=1 // pred_check
      _
    $region19: #{auxiliary_mlp.1} parent=1 // pred_check_branch
      %43 = sbr.rel (0) target = $region21
    $region20: #{auxiliary_mlp.1} parent=1 // pred_region
      _
    $region21: #{auxiliary_mlp.1} parent=1 // pred_fallthru
      _
    // Predicated region
    $region22: #{auxiliary_mlp.1} parent=1 // pred_check
      _
    $region23: #{auxiliary_mlp.1} parent=1 // pred_check_branch
      %45 = sbr.rel (0) target = $region25
    $region24: #{auxiliary_mlp.1} parent=1 // pred_region
      _
    $region25: #{auxiliary_mlp.1} parent=1 // pred_fallthru
      _
    // Predicated region
    $region26: #{auxiliary_mlp.1} parent=1 // pred_check
      _
    $region27: #{auxiliary_mlp.1} parent=1 // pred_check_branch
      %47 = sbr.rel (0) target = $region29
    $region28: #{auxiliary_mlp.1} parent=1 // pred_region
      _
    $region29: #{auxiliary_mlp.1} parent=1 // pred_fallthru
      _
    // Predicated region
    $region30: #{auxiliary_mlp.1} parent=1 // pred_check
      _
    $region31: #{auxiliary_mlp.1} parent=1 // pred_check_branch
      %49 = sbr.rel (0) target = $region33
    $region32: #{auxiliary_mlp.1} parent=1 // pred_region
      %50 = dma.done [#allocation3], 256
    $region33: #{auxiliary_mlp.1} parent=1 // pred_fallthru
      _
    // Predicated region
    $region34: #{auxiliary_mlp.1} parent=1 // pred_check
      _
    $region35: #{auxiliary_mlp.1} parent=1 // pred_check_branch
      %52 = sbr.rel (0) target = $region37
    $region36: #{auxiliary_mlp.1} parent=1 // pred_region
      %53 = dma.done [#allocation5], 512
    $region37: #{auxiliary_mlp.1} parent=1 // pred_fallthru
      _
    %v54 = vld [vmem:[#allocation2] sm:$0xff]
    %v55 = vld [vmem:[#allocation2 + $0x8] sm:$0xff]
    %v56 = vld [vmem:[#allocation4] sm:$0xff]
    %v57 = vld [vmem:[#allocation4 + $0x8] sm:$0xff]
    %v58 = vld [vmem:[#allocation4 + $0x10] sm:$0xff]
    %v59 = vld [vmem:[#allocation4 + $0x18] sm:$0xff]
    %v60 = vld [vmem:[%s2] sm:$0x1]
    %v62 = vlaneseq
    %v63 = vshrl.u32 %v62, 7
    %v64 = vsub.s32 0, %v63
    %v65 = vrot.slane %v60, %v64
    %vm67 = vcmask 261120
    %v69 = vsel %vm67, %v54, 0
    %v72 = vsel %vm67, %v55, 0
    %74 = vmatprep.subr.mxu0 0.0
    %75 = vmatpush1.msra.mxu0 %v56
    %76 = vmatprep.subr.mxu0 0.0
    %77 = vmatpush1.msra.mxu0 %v57
    %78 = vmatprep.subr.mxu0 0.0
    %79 = vmatpush1.msra.mxu0 %v58
    %80 = vmatprep.subr.mxu0 0.0
    %81 = vmatpush1.msra.mxu0 %v59
    %82 = vmatprep.subr.mxu0 0.0
    %83 = vmatpush1.msra.mxu0 0.0
    %84 = vmatprep.subr.mxu0 0.0
    %85 = vmatpush1.msra.mxu0 0.0
    %86 = vmatprep.subr.mxu0 0.0
    %87 = vmatpush1.msra.mxu0 0.0
    %88 = vmatprep.subr.mxu0 0.0
    %89 = vmatpush1.msra.mxu0 0.0
    %90 = vmatprep.subr.mxu0 0.0
    %91 = vmatpush1.msra.mxu0 0.0
    %92 = vmatprep.subr.mxu0 0.0
    %93 = vmatpush1.msra.mxu0 0.0
    %94 = vmatprep.subr.mxu0 0.0
    %95 = vmatpush1.msra.mxu0 0.0
    %96 = vmatprep.subr.mxu0 0.0
    %97 = vmatpush1.msra.mxu0 0.0
    %98 = vmatprep.subr.mxu0 0.0
    %99 = vmatpush1.msra.mxu0 0.0
    %100 = vmatprep.subr.mxu0 0.0
    %101 = vmatpush1.msra.mxu0 0.0
    %102 = vmatprep.subr.mxu0 0.0
    %103 = vmatpush1.msra.mxu0 0.0
    %104 = vmatprep.subr.mxu0 0.0
    %105 = vmatpush1.msra.mxu0 0.0
    %106 = vmatprep.subr.mxu0 0.0
    %107 = vmatpush1.msra.mxu0 0.0
    %108 = vmatprep.subr.mxu0 0.0
    %109 = vmatpush1.msra.mxu0 0.0
    %110 = vmatprep.subr.mxu0 0.0
    %111 = vmatpush1.msra.mxu0 0.0
    %112 = vmatprep.subr.mxu0 0.0
    %113 = vmatpush1.msra.mxu0 0.0
    %114 = vmatprep.subr.mxu0 0.0
    %115 = vmatpush1.msra.mxu0 0.0
    %116 = vmatprep.subr.mxu0 0.0
    %117 = vmatpush1.msra.mxu0 0.0
    %118 = vmatprep.subr.mxu0 0.0
    %119 = vmatpush1.msra.mxu0 0.0
    %120 = vmatprep.subr.mxu0 0.0
    %121 = vmatpush1.msra.mxu0 0.0
    %122 = vmatprep.subr.mxu0 0.0
    %123 = vmatpush1.msra.mxu0 0.0
    %124 = vmatprep.subr.mxu0 0.0
    %125 = vmatpush1.msra.mxu0 0.0
    %126 = vmatprep.subr.mxu0 0.0
    %127 = vmatpush1.msra.mxu0 0.0
    %128 = vmatprep.subr.mxu0 0.0
    %129 = vmatpush1.msra.mxu0 0.0
    %130 = vmatprep.subr.mxu0 0.0
    %131 = vmatpush1.msra.mxu0 0.0
    %132 = vmatprep.subr.mxu0 0.0
    %133 = vmatpush1.msra.mxu0 0.0
    %134 = vmatprep.subr.mxu0 0.0
    %135 = vmatpush1.msra.mxu0 0.0
    %136 = vmatprep.subr.mxu0 0.0
    %137 = vmatpush1.msra.mxu0 0.0
    %138 = vmatprep.mubr.f32.mxu0 0.0
    %139 = vmatmul.mubr.f32.gmra.mrb[0].mxu0 %v69
    %v140 = vpop.f32.mrb[0].mxu0
    %v141 = vadd.f32 %v65, %v140
    %v142 = vpop.f32.mrb[0].mxu0
    %143 = vmatprep.mubr.f32.mxu0 0.0
    %144 = vmatmul.mubr.f32.gmra.mrb[0].mxu0 %v72
    %v145 = vpop.f32.mrb[0].mxu0
    %v146 = vadd.f32 %v65, %v145
    %v147 = vpop.f32.mrb[0].mxu0
    %148 = vdwg.mxu0
    %v149 = vmax.f32 %v141, 0.0
    %v150 = vmax.f32 %v146, 0.0
    %v151 = vld [vmem:[%s3] sm:$0xff]
    %v152 = vld [vmem:[%s3 + $0x8] sm:$0xff]
    %v153 = vld [vmem:[%s3 + $0x10] sm:$0xff]
    %v154 = vld [vmem:[%s3 + $0x18] sm:$0xff]
    %v155 = vld [vmem:[%s3 + $0x20] sm:$0xff]
    %v156 = vld [vmem:[%s3 + $0x28] sm:$0xff]
    %v157 = vld [vmem:[%s3 + $0x30] sm:$0xff]
    %v158 = vld [vmem:[%s3 + $0x38] sm:$0xff]
    %v159 = vld [vmem:[%s3 + $0x40] sm:$0xff]
    %v160 = vld [vmem:[%s3 + $0x48] sm:$0xff]
    %v161 = vld [vmem:[%s3 + $0x50] sm:$0xff]
    %v162 = vld [vmem:[%s3 + $0x58] sm:$0xff]
    %v163 = vld [vmem:[%s3 + $0x60] sm:$0xff]
    %v164 = vld [vmem:[%s3 + $0x68] sm:$0xff]
    %v165 = vld [vmem:[%s3 + $0x70] sm:$0xff]
    %v166 = vld [vmem:[%s3 + $0x78] sm:$0xff]
    %v167 = vld [vmem:[%s4] sm:$0x1]
    %v169 = vlaneseq
    %v170 = vshrl.u32 %v169, 7
    %v171 = vsub.s32 0, %v170
    %v172 = vrot.slane %v167, %v171
    %174 = vmatprep.subr.mxu0 0.0
    %175 = vmatpush1.msra.mxu0 %v151
    %176 = vmatprep.subr.mxu0 0.0
    %177 = vmatpush1.msra.mxu0 %v152
    %178 = vmatprep.subr.mxu0 0.0
    %179 = vmatpush1.msra.mxu0 %v153
    %180 = vmatprep.subr.mxu0 0.0
    %181 = vmatpush1.msra.mxu0 %v154
    %182 = vmatprep.subr.mxu0 0.0
    %183 = vmatpush1.msra.mxu0 %v155
    %184 = vmatprep.subr.mxu0 0.0
    %185 = vmatpush1.msra.mxu0 %v156
    %186 = vmatprep.subr.mxu0 0.0
    %187 = vmatpush1.msra.mxu0 %v157
    %188 = vmatprep.subr.mxu0 0.0
    %189 = vmatpush1.msra.mxu0 %v158
    %190 = vmatprep.subr.mxu0 0.0
    %191 = vmatpush1.msra.mxu0 %v159
    %192 = vmatprep.subr.mxu0 0.0
    %193 = vmatpush1.msra.mxu0 %v160
    %194 = vmatprep.subr.mxu0 0.0
    %195 = vmatpush1.msra.mxu0 %v161
    %196 = vmatprep.subr.mxu0 0.0
    %197 = vmatpush1.msra.mxu0 %v162
    %198 = vmatprep.subr.mxu0 0.0
    %199 = vmatpush1.msra.mxu0 %v163
    %200 = vmatprep.subr.mxu0 0.0
    %201 = vmatpush1.msra.mxu0 %v164
    %202 = vmatprep.subr.mxu0 0.0
    %203 = vmatpush1.msra.mxu0 %v165
    %204 = vmatprep.subr.mxu0 0.0
    %205 = vmatpush1.msra.mxu0 %v166
    %206 = vmatprep.subr.mxu0 0.0
    %207 = vmatpush1.msra.mxu0 0.0
    %208 = vmatprep.subr.mxu0 0.0
    %209 = vmatpush1.msra.mxu0 0.0
    %210 = vmatprep.subr.mxu0 0.0
    %211 = vmatpush1.msra.mxu0 0.0
    %212 = vmatprep.subr.mxu0 0.0
    %213 = vmatpush1.msra.mxu0 0.0
    %214 = vmatprep.subr.mxu0 0.0
    %215 = vmatpush1.msra.mxu0 0.0
    %216 = vmatprep.subr.mxu0 0.0
    %217 = vmatpush1.msra.mxu0 0.0
    %218 = vmatprep.subr.mxu0 0.0
    %219 = vmatpush1.msra.mxu0 0.0
    %220 = vmatprep.subr.mxu0 0.0
    %221 = vmatpush1.msra.mxu0 0.0
    %222 = vmatprep.subr.mxu0 0.0
    %223 = vmatpush1.msra.mxu0 0.0
    %224 = vmatprep.subr.mxu0 0.0
    %225 = vmatpush1.msra.mxu0 0.0
    %226 = vmatprep.subr.mxu0 0.0
    %227 = vmatpush1.msra.mxu0 0.0
    %228 = vmatprep.subr.mxu0 0.0
    %229 = vmatpush1.msra.mxu0 0.0
    %230 = vmatprep.subr.mxu0 0.0
    %231 = vmatpush1.msra.mxu0 0.0
    %232 = vmatprep.subr.mxu0 0.0
    %233 = vmatpush1.msra.mxu0 0.0
    %234 = vmatprep.subr.mxu0 0.0
    %235 = vmatpush1.msra.mxu0 0.0
    %236 = vmatprep.subr.mxu0 0.0
    %237 = vmatpush1.msra.mxu0 0.0
    %238 = vmatprep.mubr.f32.mxu0 0.0
    %239 = vmatmul.mubr.f32.gmra.mrb[0].mxu0 %v149
    %v240 = vpop.f32.mrb[0].mxu0
    %v241 = vadd.f32 %v172, %v240
    %v242 = vpop.f32.mrb[0].mxu0
    %243 = vmatprep.mubr.f32.mxu0 0.0
    %244 = vmatmul.mubr.f32.gmra.mrb[0].mxu0 %v150
    %v245 = vpop.f32.mrb[0].mxu0
    %v246 = vadd.f32 %v172, %v245
    %v247 = vpop.f32.mrb[0].mxu0
    %248 = vdwg.mxu0
    %v249 = vmax.f32 %v241, 0.0
    %v250 = vmax.f32 %v246, 0.0
    %v251 = vld [vmem:[%s5] sm:$0xff]
    %v252 = vld [vmem:[%s5 + $0x8] sm:$0xff]
    %v253 = vld [vmem:[%s5 + $0x10] sm:$0xff]
    %v254 = vld [vmem:[%s5 + $0x18] sm:$0xff]
    %v255 = vld [vmem:[%s5 + $0x20] sm:$0xff]
    %v256 = vld [vmem:[%s5 + $0x28] sm:$0xff]
    %v257 = vld [vmem:[%s5 + $0x30] sm:$0xff]
    %v258 = vld [vmem:[%s5 + $0x38] sm:$0xff]
    %v259 = vld [vmem:[%s5 + $0x40] sm:$0xff]
    %v260 = vld [vmem:[%s5 + $0x48] sm:$0xff]
    %v261 = vld [vmem:[%s5 + $0x50] sm:$0xff]
    %v262 = vld [vmem:[%s5 + $0x58] sm:$0xff]
    %v263 = vld [vmem:[%s5 + $0x60] sm:$0xff]
    %v264 = vld [vmem:[%s5 + $0x68] sm:$0xff]
    %v265 = vld [vmem:[%s5 + $0x70] sm:$0xff]
    %v266 = vld [vmem:[%s5 + $0x78] sm:$0xff]
    %v267 = vld [vmem:[%s6] sm:$0x1]
    %v269 = vlaneseq
    %v270 = vshrl.u32 %v269, 7
    %v271 = vsub.s32 0, %v270
    %v272 = vrot.slane %v267, %v271
    %274 = vmatprep.subr.mxu0 0.0
    %275 = vmatpush1.msra.mxu0 %v251
    %276 = vmatprep.subr.mxu0 0.0
    %277 = vmatpush1.msra.mxu0 %v252
    %278 = vmatprep.subr.mxu0 0.0
    %279 = vmatpush1.msra.mxu0 %v253
    %280 = vmatprep.subr.mxu0 0.0
    %281 = vmatpush1.msra.mxu0 %v254
    %282 = vmatprep.subr.mxu0 0.0
    %283 = vmatpush1.msra.mxu0 %v255
    %284 = vmatprep.subr.mxu0 0.0
    %285 = vmatpush1.msra.mxu0 %v256
    %286 = vmatprep.subr.mxu0 0.0
    %287 = vmatpush1.msra.mxu0 %v257
    %288 = vmatprep.subr.mxu0 0.0
    %289 = vmatpush1.msra.mxu0 %v258
    %290 = vmatprep.subr.mxu0 0.0
    %291 = vmatpush1.msra.mxu0 %v259
    %292 = vmatprep.subr.mxu0 0.0
    %293 = vmatpush1.msra.mxu0 %v260
    %294 = vmatprep.subr.mxu0 0.0
    %295 = vmatpush1.msra.mxu0 %v261
    %296 = vmatprep.subr.mxu0 0.0
    %297 = vmatpush1.msra.mxu0 %v262
    %298 = vmatprep.subr.mxu0 0.0
    %299 = vmatpush1.msra.mxu0 %v263
    %300 = vmatprep.subr.mxu0 0.0
    %301 = vmatpush1.msra.mxu0 %v264
    %302 = vmatprep.subr.mxu0 0.0
    %303 = vmatpush1.msra.mxu0 %v265
    %304 = vmatprep.subr.mxu0 0.0
    %305 = vmatpush1.msra.mxu0 %v266
    %306 = vmatprep.subr.mxu0 0.0
    %307 = vmatpush1.msra.mxu0 0.0
    %308 = vmatprep.subr.mxu0 0.0
    %309 = vmatpush1.msra.mxu0 0.0
    %310 = vmatprep.subr.mxu0 0.0
    %311 = vmatpush1.msra.mxu0 0.0
    %312 = vmatprep.subr.mxu0 0.0
    %313 = vmatpush1.msra.mxu0 0.0
    %314 = vmatprep.subr.mxu0 0.0
    %315 = vmatpush1.msra.mxu0 0.0
    %316 = vmatprep.subr.mxu0 0.0
    %317 = vmatpush1.msra.mxu0 0.0
    %318 = vmatprep.subr.mxu0 0.0
    %319 = vmatpush1.msra.mxu0 0.0
    %320 = vmatprep.subr.mxu0 0.0
    %321 = vmatpush1.msra.mxu0 0.0
    %322 = vmatprep.subr.mxu0 0.0
    %323 = vmatpush1.msra.mxu0 0.0
    %324 = vmatprep.subr.mxu0 0.0
    %325 = vmatpush1.msra.mxu0 0.0
    %326 = vmatprep.subr.mxu0 0.0
    %327 = vmatpush1.msra.mxu0 0.0
    %328 = vmatprep.subr.mxu0 0.0
    %329 = vmatpush1.msra.mxu0 0.0
    %330 = vmatprep.subr.mxu0 0.0
    %331 = vmatpush1.msra.mxu0 0.0
    %332 = vmatprep.subr.mxu0 0.0
    %333 = vmatpush1.msra.mxu0 0.0
    %334 = vmatprep.subr.mxu0 0.0
    %335 = vmatpush1.msra.mxu0 0.0
    %336 = vmatprep.subr.mxu0 0.0
    %337 = vmatpush1.msra.mxu0 0.0
    %338 = vmatprep.mubr.f32.mxu0 0.0
    %339 = vmatmul.mubr.f32.gmra.mrb[0].mxu0 %v249
    %v340 = vpop.f32.mrb[0].mxu0
    %v341 = vadd.f32 %v272, %v340
    %v342 = vpop.f32.mrb[0].mxu0
    %343 = vmatprep.mubr.f32.mxu0 0.0
    %344 = vmatmul.mubr.f32.gmra.mrb[0].mxu0 %v250
    %v345 = vpop.f32.mrb[0].mxu0
    %v346 = vadd.f32 %v272, %v345
    %v347 = vpop.f32.mrb[0].mxu0
    %348 = vdwg.mxu0
    %vm349 = vcmask 23552
    %350 = vst.msk [vmem:[%s7] sm:$0xff] %vm349, %v341
    %351 = vst.msk [vmem:[%s7 + $0x8] sm:$0xff] %vm349, %v346
    // Predicated region
    $region38: #{auxiliary_mlp.1} parent=1 // pred_check
      _
    $region39: #{auxiliary_mlp.1} parent=1 // pred_check_branch
      %353 = sbr.rel (0) target = $region41
    $region40: #{auxiliary_mlp.1} parent=1 // pred_region
      _
    $region41: #{auxiliary_mlp.1} parent=1 // pred_fallthru
      _
    // Predicated region
    $region42: #{auxiliary_mlp.1} parent=1 // pred_check
      _
    $region43: #{auxiliary_mlp.1} parent=1 // pred_check_branch
      %355 = sbr.rel (0) target = $region45
    $region44: #{auxiliary_mlp.1} parent=1 // pred_region
      _
    $region45: #{auxiliary_mlp.1} parent=1 // pred_fallthru
      _
    %356 = vsyncpa [#allocation3], 1
    %357 = vsyncpa [#allocation5], 1

</llo_original>
